<compile_context>
chip_gen: v7x
topology: tpu7x:2x2x1
jax: 0.10.0
libtpu: 0.0.40
codegen_flags: <defaults>
</compile_context>

<pallas_src>
import functools

import numpy as np
import jax
import jax.numpy as jnp
from jax import lax
from jax.experimental import pallas as pl
from jax.experimental.pallas import tpu as pltpu


# ---------------- parameter transform (matches eval-mode PyTorch Conv2d.forward) ----------------

def _normalized_conv_weight(w, eps=1e-4):
    """weight_normalize(w) / sqrt(fan_in), with alpha = 1/sqrt(fan_in)."""
    O, C, kh, kw = w.shape
    fan_in = C * kh * kw
    n = jnp.sqrt(jnp.sum(jnp.square(w), axis=(1, 2, 3), keepdims=True))   # (O,1,1,1)
    alpha = float(np.sqrt(1.0 / fan_in))
    wn = w / (eps + alpha * n)
    return wn / float(np.sqrt(fan_in))


# ---------------- Pallas kernels ----------------

def _pool_kernel(x_ref, o_ref):
    # x_ref: (4*C, tL) -- the four 2x2-window elements stacked along the sublane dim.
    # o_ref: (C,   tL) -- flattened, lane-dense NCHW output tile.
    C = o_ref.shape[0]
    xf = x_ref[...].astype(jnp.float32)
    o_ref[...] = (0.25 * (xf[0:C] + xf[C:2 * C] + xf[2 * C:3 * C] + xf[3 * C:4 * C])
                  ).astype(o_ref.dtype)


def _pool_conv_kernel(x_ref, w_ref, o_ref, *, width):
    # x_ref: (4*C, (th2+4)*W2) regrouped padded-map rows [r*th2, r*th2+th2+4) for this tile
    #        (2 zero pooled rows pad each side of the image -> every tap slice in bounds).
    # w_ref: (O, 9*C)  w[o, (ky*3+kx)*C + c]  (bf16 by default)
    # o_ref: (O, th2*W2) flattened, lane-dense NCHW output row tile.
    W2 = width
    _, L = o_ref.shape
    C = x_ref.shape[0] // 4

    # 2x2 average pool: three VPU adds + one scale over contiguous (C, Lb) slabs (f32).
    xf = x_ref[...].astype(jnp.float32)
    pflat = 0.25 * (xf[0:C] + xf[C:2 * C] + xf[2 * C:3 * C] + xf[3 * C:4 * C])   # (C, Lb)

    # Column-boundary masks: the only out-of-image reads in W for a 'same' 3x3 conv.
    col = lax.broadcasted_iota(jnp.int32, (1, L), 1) % W2
    not_first = col != 0
    not_last = col != (W2 - 1)

    # im2col: nine lane-shifted static slices of the pooled map -> one K=9C MXU matmul.
    # Taps are cast to the weight dtype right after masking; accumulation stays f32.
    taps = []
    for ky in range(3):
        for kx in range(3):
            off = (ky + 1) * W2 + (kx - 1)            # static; always in bounds
            t = pflat[:, off:off + L]                 # (C, L)
            if kx == 0:
                t = jnp.where(not_first, t, 0.0)
            elif kx == 2:
                t = jnp.where(not_last, t, 0.0)
            taps.append(t.astype(w_ref.dtype))
    im2col = jnp.concatenate(taps, axis=0)            # (9C, L)
    # TODO(synk): for very large C/O (late UNet blocks on v7x), switch to nine accumulating
    # (O,C)@(C,L) matmuls and/or tile O so the resident weight block stays bounded.
    acc = jnp.dot(w_ref[...], im2col, preferred_element_type=jnp.float32)     # (O, L) f32
    o_ref[...] = acc.astype(o_ref.dtype)


# ---------------- tiling helpers ----------------

def _vmem_budget():
    """(per-step tile budget bytes, vmem_limit_bytes), chosen per TPU generation."""
    cap = None
    try:
        cap = getattr(pltpu.get_tpu_info(), "vmem_capacity_bytes", None)
    except Exception:
        cap = None
    if cap is not None and cap >= 100 * 1024 * 1024:        # v5e / v6e: 128 MiB VMEM
        return 20 * 1024 * 1024, 64 * 1024 * 1024
    return 6 * 1024 * 1024, 32 * 1024 * 1024                # v7x (64 MiB) / unknown


def _choose_lane_tile(Lp, per_elem_bytes, budget):
    """Largest lane tile dividing Lp that is a multiple of 128 (or == Lp) and fits budget."""
    cands = sorted({d for d in range(128, Lp, 128) if Lp % d == 0} | {Lp})
    fitting = [d for d in cands if d * per_elem_bytes <= budget]
    return max(fitting) if fitting else min(cands)


def _choose_row_tile(H2, W2, per_l_bytes, budget):
    """Largest row tile dividing H2 whose flattened extent th2*W2 is a multiple of 128
    (or covers the full map -> always a legal block) and fits the VMEM budget."""
    cands = sorted({d for d in range(1, H2) if H2 % d == 0 and (d * W2) % 128 == 0} | {H2})
    fitting = [d for d in cands if d * W2 * per_l_bytes <= budget]
    return max(fitting) if fitting else min(cands)


# ---------------- wrapper ----------------

def downsample2d(x_nchw, conv_weight=None, *, use_conv=False, row_tile=None,
                 matmul_dtype=jnp.bfloat16):
    """Forward pass of Downsample2D. x_nchw: (N, C, H, W). (The module's `scale` arg is unused.)"""
    N, C, H, W = x_nchw.shape
    assert H % 2 == 0 and W % 2 == 0, "AvgPool2d(2) path assumes even H, W"
    H2, W2 = H // 2, W // 2
    Lp = H2 * W2
    dtype = x_nchw.dtype
    in_bytes = jnp.dtype(dtype).itemsize
    budget, vmem_limit = _vmem_budget()

    if not use_conv:
        # per-output-element VMEM: input (4C, double-buffered) + f32 temps + output (dbuf).
        per_elem = 4 * C * in_bytes * 2 + 4 * C * 4 + C * 4 + C * in_bytes * 2
        if row_tile is not None:
            tL = row_tile * W2
            assert Lp % tL == 0 and (tL % 128 == 0 or tL == Lp)
        else:
            tL = _choose_lane_tile(Lp, per_elem, budget)
        nL = Lp // tL

        # Regroup: x_prep[n, (p*2+q)*C + c, y*W2 + x] = x[n, c, 2y+p, 2x+q]
        # (window axis folded into the sublane dim -> padding-free tiles, VPU-only pool).
        # TODO(synk): this regroup is a standalone HBM pass unless XLA fuses it into the
        # producer; fusing it into the kernel (stride-2 lane compaction) is not done here.
        x_prep = (x_nchw.reshape(N, C, H2, 2, W2, 2)
                  .transpose(0, 3, 5, 1, 2, 4)
                  .reshape(N, 4 * C, Lp))

        y = pl.pallas_call(
            _pool_kernel,
            out_shape=jax.ShapeDtypeStruct((N, C, Lp), dtype),
            grid=(N, nL),
            in_specs=[pl.BlockSpec((None, 4 * C, tL), lambda n, l: (n, 0, l))],
            out_specs=pl.BlockSpec((None, C, tL), lambda n, l: (n, 0, l)),
            compiler_params=pltpu.CompilerParams(
                dimension_semantics=("parallel", "parallel"),
                vmem_limit_bytes=vmem_limit),
        )(x_prep)
        return y.reshape(N, C, H2, W2)

    O = conv_weight.shape[0]
    assert conv_weight.shape == (O, C, 3, 3)
    mm_bytes = jnp.dtype(matmul_dtype).itemsize

    # per-output-element VMEM (conservative): input tile (incl. ~1.5x halo factor, dbuf),
    # f32 pooled map + tap temporaries, im2col, f32 accumulator, output (dbuf).
    per_l = (4 * C * in_bytes * 2 * 3) // 2 + 4 * C * 4 * 2 + 9 * C * mm_bytes \
        + O * 4 + O * in_bytes * 2
    w_bytes = O * 9 * C * mm_bytes * 2            # resident weight block (double-buffered)
    tile_budget = max(budget - w_bytes, 256 * 1024)
    if row_tile is not None:
        th2 = row_tile
        assert H2 % th2 == 0 and ((th2 * W2) % 128 == 0 or th2 == H2)
    else:
        th2 = _choose_row_tile(H2, W2, per_l, tile_budget)
    R = H2 // th2
    Lb = (th2 + 4) * W2

    # Pad by 2 pooled rows (4 image rows) top/bottom, regroup the 2x2 window onto the
    # channel (sublane) dim, and pre-gather each tile's (th2+4) rows so a SINGLE DMA
    # stream per grid step carries the tile and its halo (no separate halo streams, no
    # in-kernel zero-row concatenation).
    Hp = H2 + 4
    x_pad = jnp.pad(x_nchw, ((0, 0), (0, 0), (4, 4), (0, 0)))
    x6 = (x_pad.reshape(N, C, Hp, 2, W2, 2)
          .transpose(0, 3, 5, 1, 2, 4))                                  # (N,2,2,C,Hp,W2)
    row_idx = np.arange(R)[:, None] * th2 + np.arange(th2 + 4)[None, :]  # (R, th2+4)
    x_prep = (x6[:, :, :, :, row_idx, :]                                 # (N,2,2,C,R,th2+4,W2)
              .transpose(0, 4, 1, 2, 3, 5, 6)                            # (N,R,2,2,C,th2+4,W2)
              .reshape(N, R, 4 * C, Lb))

    w_eff = _normalized_conv_weight(conv_weight.astype(jnp.float32))
    # (O,C,3,3) -> (O, 9C) with column index (ky*3 + kx)*C + c (matches the im2col order);
    # bf16 operands by default, f32 accumulation inside the kernel.
    w9 = jnp.transpose(w_eff, (0, 2, 3, 1)).reshape(O, 9 * C).astype(matmul_dtype)

    kernel = functools.partial(_pool_conv_kernel, width=W2)
    y = pl.pallas_call(
        kernel,
        out_shape=jax.ShapeDtypeStruct((N, O, Lp), dtype),
        grid=(N, R),
        in_specs=[
            pl.BlockSpec((None, None, 4 * C, Lb), lambda n, r: (n, r, 0, 0)),
            pl.BlockSpec((O, 9 * C), lambda n, r: (0, 0)),   # constant block, stays resident
        ],
        out_specs=pl.BlockSpec((None, O, th2 * W2), lambda n, r: (n, 0, r)),
        compiler_params=pltpu.CompilerParams(
            dimension_semantics=("parallel", "parallel"),
            vmem_limit_bytes=vmem_limit),
    )(x_prep, w9)
    return y.reshape(N, O, H2, W2)


# ---------------- reference (pure JAX, mirrors the PyTorch eval-mode forward) ----------------

def _reference(x, w=None, use_conv=False):
    N, C, H, W = x.shape
    H2, W2 = H // 2, W // 2
    pooled = x.reshape(N, C, H2, 2, W2, 2).mean(axis=(3, 5))
    if not use_conv:
        return pooled
    w_eff = _normalized_conv_weight(w.astype(jnp.float32))
    return lax.conv_general_dilated(pooled, w_eff, (1, 1), "SAME",
                                    dimension_numbers=("NCHW", "OIHW", "NCHW"))


if __name__ == "__main__":
    key = jax.random.PRNGKey(0)
    kx, kw, kx2 = jax.random.split(key, 3)

    # Downsample2D(channels=4, use_conv=True, out_channels=8) at (2, 4, 16, 16)
    N, C, H, W, O = 2, 4, 16, 16, 8
    x = jax.random.normal(kx, (N, C, H, W), jnp.float32)
    conv_w = 0.1 * jax.random.normal(kw, (O, C, 3, 3), jnp.float32)

    pool_fn = jax.jit(lambda a: downsample2d(a, use_conv=False))
    conv_fn = jax.jit(lambda a, w: downsample2d(a, w, use_conv=True))
    conv_fn_f32 = jax.jit(lambda a, w: downsample2d(a, w, use_conv=True,
                                                    matmul_dtype=jnp.float32))

    y_pool = jax.block_until_ready(pool_fn(x))
    y_conv = jax.block_until_ready(conv_fn(x, conv_w))
    y_conv_f32 = jax.block_until_ready(conv_fn_f32(x, conv_w))
    assert y_pool.shape == (N, C, H // 2, W // 2)
    assert y_conv.shape == (N, O, H // 2, W // 2)

    np.testing.assert_allclose(np.asarray(y_pool),
                               np.asarray(_reference(x, use_conv=False)),
                               rtol=1e-5, atol=1e-5)
    np.testing.assert_allclose(np.asarray(y_conv_f32),
                               np.asarray(_reference(x, conv_w, use_conv=True)),
                               rtol=1e-4, atol=1e-4)
    np.testing.assert_allclose(np.asarray(y_conv),   # bf16 MXU operands, f32 accumulation
                               np.asarray(_reference(x, conv_w, use_conv=True)),
                               rtol=3e-2, atol=3e-2)

    # Exercise the multi-row-tile (halo) path: H2 = 16 split into two 8-row tiles.
    x2 = jax.random.normal(kx2, (1, C, 32, 32), jnp.float32)
    pool_fn2 = jax.jit(lambda a: downsample2d(a, use_conv=False, row_tile=8))
    conv_fn2 = jax.jit(lambda a, w: downsample2d(a, w, use_conv=True, row_tile=8))
    y2_pool = jax.block_until_ready(pool_fn2(x2))
    y2_conv = jax.block_until_ready(conv_fn2(x2, conv_w))
    np.testing.assert_allclose(np.asarray(y2_pool),
                               np.asarray(_reference(x2, use_conv=False)),
                               rtol=1e-5, atol=1e-5)
    np.testing.assert_allclose(np.asarray(y2_conv),
                               np.asarray(_reference(x2, conv_w, use_conv=True)),
                               rtol=3e-2, atol=3e-2)

    print("KERNEL_OK")
</pallas_src>

<mosaic_0001>
module attributes {stable_mosaic.version = 11 : i64} {
  func.func @_pool_kernel(%arg0: i32, %arg1: i32, %arg2: memref<1x16x64xf32, #tpu.memory_space<vmem>>, %arg3: memref<1x4x64xf32, #tpu.memory_space<vmem>>) attributes {dimension_semantics = [#tpu.dimension_semantics<parallel>, #tpu.dimension_semantics<parallel>], iteration_bounds = array<i64: 2, 1>, scalar_prefetch = 0 : i64, scratch_operands = 0 : i64, tpu.core_type = #tpu.core_type<tc>, window_params = [{transform_indices = @transform_0, window_bounds = array<i64: 1, 16, 64>}, {transform_indices = @transform_1, window_bounds = array<i64: 1, 4, 64>}]} {
    %c0 = arith.constant 0 : index
    %c0_0 = arith.constant 0 : index
    %c0_1 = arith.constant 0 : index
    %0 = vector.load %arg2[%c0, %c0_0, %c0_1] : memref<1x16x64xf32, #tpu.memory_space<vmem>>, vector<1x16x64xf32>
    %1 = vector.shape_cast %0 : vector<1x16x64xf32> to vector<16x64xf32>
    %2 = vector.extract_strided_slice %1 {offsets = [0, 0], sizes = [4, 64], strides = [1, 1]} : vector<16x64xf32> to vector<4x64xf32>
    %3 = vector.extract_strided_slice %1 {offsets = [4, 0], sizes = [4, 64], strides = [1, 1]} : vector<16x64xf32> to vector<4x64xf32>
    %4 = arith.addf %2, %3 : vector<4x64xf32>
    %5 = vector.extract_strided_slice %1 {offsets = [8, 0], sizes = [4, 64], strides = [1, 1]} : vector<16x64xf32> to vector<4x64xf32>
    %6 = arith.addf %4, %5 : vector<4x64xf32>
    %7 = vector.extract_strided_slice %1 {offsets = [12, 0], sizes = [4, 64], strides = [1, 1]} : vector<16x64xf32> to vector<4x64xf32>
    %8 = arith.addf %6, %7 : vector<4x64xf32>
    %cst = arith.constant 2.500000e-01 : f32
    %9 = vector.broadcast %cst : f32 to vector<4x64xf32>
    %10 = arith.mulf %9, %8 : vector<4x64xf32>
    %c0_2 = arith.constant 0 : index
    %c0_3 = arith.constant 0 : index
    %c0_4 = arith.constant 0 : index
    %11 = vector.load %arg3[%c0_2, %c0_3, %c0_4] : memref<1x4x64xf32, #tpu.memory_space<vmem>>, vector<1x4x64xf32>
    %12 = vector.shape_cast %11 : vector<1x4x64xf32> to vector<4x64xf32>
    %13 = vector.shape_cast %10 : vector<4x64xf32> to vector<1x4x64xf32>
    tpu.vector_store %arg3[%c0_2, %c0_3, %c0_4], %13 {strides = array<i32>} : memref<1x4x64xf32, #tpu.memory_space<vmem>>, vector<1x4x64xf32>,
    return
  }
  func.func @transform_0(%arg0: i32, %arg1: i32) -> (i32, i32, i32) {
    %c0_i32 = arith.constant 0 : i32
    %c0_i32_0 = arith.constant 0 : i32
    return %arg0, %c0_i32, %arg1 : i32, i32, i32
  }
  func.func @transform_1(%arg0: i32, %arg1: i32) -> (i32, i32, i32) {
    %c0_i32 = arith.constant 0 : i32
    %c0_i32_0 = arith.constant 0 : i32
    return %arg0, %c0_i32, %arg1 : i32, i32, i32
  }
}

</mosaic_0001>

<llo_original>
// kernel: _lambda_.1
$region0: #{_lambda_.1}
  #allocation0 [shape = 'u32[]', space=smem, size = 0x4, offset = 0x4, fixed_abs, tag = 'smem constant byte address 0x4 - core index']
  #allocation1 [shape = 'u32[144,128]{1,0:T(1,128)}', space=vmem, size = 0x12000, scoped, tag = 'internal scratch']
  %s0 = inlined_call_operand.vmem [shape: f32[2,16,64], index: 0, kind: input, shape index: {}]
  %s1 = inlined_call_operand.vmem [shape: f32[2,4,64], index: 1, kind: output, shape index: {}]
  %s2 = sld [smem:[#allocation0]]
  $region37: #{_lambda_.1} parent=0
    _
  %s4 = ssub.s32 1, %s2
  %s5 = scalar_select 0, %s4, %s2
  loop: start=0, step=1, limit=4
  $region2: #{_lambda_.1} parent=0 // loop_pre_header
    _
  $region3: #{_lambda_.1} parent=0 // loop_header
    %s7 = sphi 0, %s11
    %p8 = scmp.ge.s32.totalorder %s7, 4
    %s14 = sphi 0, %s26
    %s15 = sphi 0, %s22
    %s16 = sphi 0, %s14
    %s17 = sphi 0, %s15
    %s18 = sphi 0, %s16
    %s19 = sphi 0, %s17
    %s31 = sphi 0, %s33
    %s34 = sphi 0, %s31
    %s35 = sphi 0, %s34
    %s51 = sphi 0, %s35
    %s59 = sphi 0, %s61
    %s62 = sphi 0, %s59
    %s63 = sphi 0, %s62
    %s79 = sphi 0, %s63
  $region4: #{_lambda_.1} parent=0 // loop_header_branch
    %10 = sbr.rel (%p8) target = $region8
  $region5: #{_lambda_.1} parent=0 // loop_body
    %s12 = ssub.s32 %s7, 1
    %s13 = ssub.s32 %s7, 2
    %s20 = sadd.s32 1, %s15
    %p21 = scmp.ge.s32.totalorder %s20, 1
    %s22 = scalar_select %p21, 0, %s20
    %s23 = sadd.s32 1, %s14
    %s24 = scalar_select %p21, %s23, %s14
    %p25 = scmp.ge.s32.totalorder %s24, 2
    %s26 = scalar_select %p25, 0, %s24
    %s27 = ssub.s32 %s14, %s26
    %s28 = ssub.s32 %s15, %s22
    %s29 = sor.u32 %s27, %s28
    %p30 = scmp.eq.s32.totalorder %s29, 0
    %s32 = sadd.s32 %s31, 1
    %s33 = scalar_select %p30, %s31, %s32
    %p36 = pneg %p30
    %p37 = scmp.eq.s32.totalorder %s7, 1
    %p38 = por %p36, %p37
    %p39 = scmp.ne.s32.totalorder %s31, %s34
    %p40 = scmp.eq.s32.totalorder %s7, 0
    %p41 = por %p39, %p40
    %p42 = scmp.ne.s32.totalorder %s31, %s34
    %p43 = scmp.eq.s32.totalorder %s12, 1
    %p44 = por %p42, %p43
    %p45 = scmp.ne.s32.totalorder %s34, %s35
    %p46 = scmp.eq.s32.totalorder %s12, 0
    %p47 = por %p45, %p46
    %p48 = scmp.ne.s32.totalorder %s34, %s35
    %p49 = scmp.eq.s32.totalorder %s13, 1
    %p50 = por %p48, %p49
    %p52 = scmp.ne.s32.totalorder %s35, %s51
    %p53 = scmp.eq.s32.totalorder %s13, 0
    %p54 = por %p52, %p53
    %s55 = ssub.s32 %s14, %s26
    %s56 = ssub.s32 %s15, %s22
    %s57 = sor.u32 %s55, %s56
    %p58 = scmp.eq.s32.totalorder %s57, 0
    %s60 = sadd.s32 %s59, 1
    %s61 = scalar_select %p58, %s59, %s60
    %p64 = pneg %p58
    %p65 = scmp.eq.s32.totalorder %s7, 1
    %p66 = por %p64, %p65
    %p67 = scmp.ne.s32.totalorder %s59, %s62
    %p68 = scmp.eq.s32.totalorder %s7, 0
    %p69 = por %p67, %p68
    %p70 = scmp.ne.s32.totalorder %s59, %s62
    %p71 = scmp.eq.s32.totalorder %s12, 1
    %p72 = por %p70, %p71
    %p73 = scmp.ne.s32.totalorder %s62, %s63
    %p74 = scmp.eq.s32.totalorder %s12, 0
    %p75 = por %p73, %p74
    %p76 = scmp.ne.s32.totalorder %s62, %s63
    %p77 = scmp.eq.s32.totalorder %s13, 1
    %p78 = por %p76, %p77
    %p80 = scmp.ne.s32.totalorder %s63, %s79
    %p81 = scmp.eq.s32.totalorder %s13, 0
    %p82 = por %p80, %p81
    %p83 = scmp.le.s32.totalorder 1, %s7
    %p84 = scmp.lt.s32.totalorder %s7, 3
    %p85 = pnand %p83, %p84
    %p86 = pneg %p85
    // Predicated region
    $region9: #{_lambda_.1} parent=5 // pred_check
      _
    $region10: #{_lambda_.1} parent=5 // pred_check_branch
      %88 = sbr.rel (%p85) target = $region12
    $region11: #{_lambda_.1} parent=5 // pred_region
      %s89 = ssub.s32 %s7, 1
    $region12: #{_lambda_.1} parent=5 // pred_fallthru
      _
    %p90 = scmp.lt.s32.totalorder %s7, 2
    // Predicated region
    $region13: #{_lambda_.1} parent=5 // pred_check
      %p91 = pneg %p90
    $region14: #{_lambda_.1} parent=5 // pred_check_branch
      %93 = sbr.rel (%p91) target = $region16
    $region15: #{_lambda_.1} parent=5 // pred_region
      // Predicated region
      $region17: #{_lambda_.1} parent=15 // pred_check
        %p94 = pneg %p41
      $region18: #{_lambda_.1} parent=15 // pred_check_branch
        %96 = sbr.rel (%p94) target = $region20
      $region19: #{_lambda_.1} parent=15 // pred_region
        %p97 = scmp.lt.s32.totalorder %s14, 1
        %s98 = scalar_select %p97, %s14, 1
        %p99 = scmp.lt.s32.totalorder %s15, 0
        %s100 = scalar_select %p99, %s15, 0
        %s101 = smul.addr %s98, 2
        %s102 = sadd.s32 %s100, %s101
        %s103 = smul.addr %s102, 8
        %s104 = scalar_lea.vmem %s0, %s103
      $region20: #{_lambda_.1} parent=15 // pred_fallthru
        _
    $region16: #{_lambda_.1} parent=5 // pred_fallthru
      _
    %p105 = scmp.le.s32.totalorder 1, %s7
    %p106 = scmp.lt.s32.totalorder %s7, 3
    %p107 = pnand %p105, %p106
    %p108 = pneg %p107
    // Predicated region
    $region21: #{_lambda_.1} parent=5 // pred_check
      _
    $region22: #{_lambda_.1} parent=5 // pred_check_branch
      %110 = sbr.rel (%p107) target = $region24
    $region23: #{_lambda_.1} parent=5 // pred_region
      %s111 = ssub.s32 %s7, 1
      %p112 = scmp.lt.s32.totalorder %s16, 1
      %s113 = scalar_select %p112, %s16, 1
      %p114 = scmp.lt.s32.totalorder %s17, 0
      %s115 = scalar_select %p114, %s17, 0
      %s116 = smul.addr %s113, 2
      %s117 = sadd.s32 %s115, %s116
      %s118 = smul.addr %s117, 8
      %s119 = scalar_lea.vmem %s0, %s118
      %p120 = pneg %p47
      %p121 = pneg %p44
      %p122 = pneg %p75
      %p123 = pneg %p72
      %p124 = scmp.lt.s32.totalorder %s16, 1
      %s125 = scalar_select %p124, %s16, 1
      %p126 = scmp.lt.s32.totalorder %s17, 0
      %s127 = scalar_select %p126, %s17, 0
      %s128 = sadd.s32 %s127, %s125
      %s129 = smul.addr %s128, 4
      %s130 = scalar_lea.vmem %s1, %s129
      %p131 = scmp.lt.s32.totalorder %s16, 1
      %s132 = scalar_select %p131, %s16, 1
      %p133 = scmp.lt.s32.totalorder %s17, 0
      %s134 = scalar_select %p133, %s17, 0
      %s135 = smul.addr %s132, 2
      %s136 = sadd.s32 %s134, %s135
      %s137 = smul.addr %s136, 8
      %s138 = scalar_lea.vmem %s0, %s137
      %p139 = scmp.lt.s32.totalorder %s16, 1
      %s140 = scalar_select %p139, %s16, 1
      %p141 = scmp.lt.s32.totalorder %s17, 0
      %s142 = scalar_select %p141, %s17, 0
      %s143 = sadd.s32 %s142, %s140
      %s144 = smul.addr %s143, 4
      %s145 = scalar_lea.vmem %s1, %s144
      %v146 = vld [vmem:[%s138] sm:$0xff]
      %v147 = vld [vmem:[%s138 + $0x8] sm:$0xff]
      %v149 = vrot.slane %v146, 4
      %v151 = vadd.f32 %v146, %v149
      %v152 = vadd.f32 %v151, %v147
      %v154 = vrot.slane %v147, 4
      %v156 = vadd.f32 %v152, %v154
      %v157 = vmul.f32 %v156, 0.25
      %vm158 = vcmask 519168
      %159 = vst.msk [vmem:[%s145] sm:$0xf] %vm158, %v157
      %p160 = scmp.lt.s32.totalorder %s16, 1
      %s161 = scalar_select %p160, %s16, 1
      %p162 = scmp.lt.s32.totalorder %s17, 0
      %s163 = scalar_select %p162, %s17, 0
      %s164 = sadd.s32 %s163, %s161
      %s165 = smul.addr %s164, 4
      %s166 = scalar_lea.vmem %s1, %s165
      // Predicated region
      $region25: #{_lambda_.1} parent=23 // pred_check
        %p167 = pneg %p72
      $region26: #{_lambda_.1} parent=23 // pred_check_branch
        %169 = sbr.rel (%p167) target = $region28
      $region27: #{_lambda_.1} parent=23 // pred_region
        _
      $region28: #{_lambda_.1} parent=23 // pred_fallthru
        _
    $region24: #{_lambda_.1} parent=5 // pred_fallthru
      _
    %p170 = scmp.le.s32.totalorder 2, %s7
    // Predicated region
    $region29: #{_lambda_.1} parent=5 // pred_check
      %p171 = pneg %p170
    $region30: #{_lambda_.1} parent=5 // pred_check_branch
      %173 = sbr.rel (%p171) target = $region32
    $region31: #{_lambda_.1} parent=5 // pred_region
      %s174 = ssub.s32 %s7, 2
      // Predicated region
      $region33: #{_lambda_.1} parent=31 // pred_check
        %p175 = pneg %p78
      $region34: #{_lambda_.1} parent=31 // pred_check_branch
        %177 = sbr.rel (%p175) target = $region36
      $region35: #{_lambda_.1} parent=31 // pred_region
        %p178 = scmp.lt.s32.totalorder %s18, 1
        %s179 = scalar_select %p178, %s18, 1
        %p180 = scmp.lt.s32.totalorder %s19, 0
        %s181 = scalar_select %p180, %s19, 0
        %s182 = sadd.s32 %s181, %s179
        %s183 = smul.addr %s182, 4
        %s184 = scalar_lea.vmem %s1, %s183
      $region36: #{_lambda_.1} parent=31 // pred_fallthru
        _
    $region32: #{_lambda_.1} parent=5 // pred_fallthru
      _
  $region6: #{_lambda_.1} parent=0 // loop_footer
    %s11 = sadd.s32 1, %s7
  $region7: #{_lambda_.1} parent=0 // loop_footer_branch
    %6 = sbr.rel target = $region3
  $region8: #{_lambda_.1} parent=0 // loop_exit
    _

</llo_original>
